<compile_context>
chip_gen: v7x
topology: tpu7x:2x2x1
jax: 0.10.0
libtpu: 0.0.40
codegen_flags: <defaults>
</compile_context>

<pallas_src>
import jax
import jax.numpy as jnp
from jax.experimental import pallas as pl
from jax.experimental.pallas import tpu as pltpu


def _task_embedding_kernel(task_ref, table_ref, w_ref, b_ref, out_ref, fused_ref):
    # task_ref : (TB, 1) int32        -- task ids for this batch tile
    # table_ref: (num_tasks, E) f32   -- embedding table (full, grid-invariant)
    # w_ref    : (E, D_pad) f32       -- fc2 weight, pre-transposed (grid-invariant)
    # b_ref    : (1, D_pad) f32       -- fc2 bias (grid-invariant)
    # out_ref  : (TB, D_pad) f32
    # fused_ref: (num_tasks, D_pad) f32 VMEM scratch -- relu(table) @ W^T + b

    # One-time precompute of the fused table (grid is sequential / "arbitrary").
    @pl.when(pl.program_id(0) == 0)
    def _():
        h = jnp.maximum(table_ref[...], 0.0)                      # relu(Embedding weights)
        fused_ref[...] = (
            jnp.dot(h, w_ref[...], preferred_element_type=jnp.float32) + b_ref[...]
        )

    task = task_ref[...]                                          # (TB, 1) int32
    tb = task.shape[0]
    num_tasks = fused_ref.shape[0]

    # Embedding lookup as a one-hot matmul against the fused (num_tasks, D) table:
    # a single MXU pass with a lane-dense RHS; the gather, relu and Linear are all
    # already folded into `fused`.
    col = jax.lax.broadcasted_iota(jnp.int32, (tb, num_tasks), 1)
    onehot = (task == col).astype(jnp.float32)                    # (TB, num_tasks), exact 0/1
    out = jnp.dot(onehot, fused_ref[...], preferred_element_type=jnp.float32)
    out_ref[...] = out.astype(out_ref.dtype)


def nlp_task_embedding(task_ids, emb_table, fc2_weight, fc2_bias, *, batch_tile=None):
    """task_ids: int[B]; emb_table: f32[num_tasks, E];
    fc2_weight: f32[D, E] (PyTorch layout); fc2_bias: f32[D]  ->  f32[B, D]"""
    B = task_ids.shape[0]
    num_tasks, E = emb_table.shape
    D = fc2_weight.shape[0]

    # Lane-dense output: pad D up to a multiple of 128 (avoids masked partial stores).
    D_pad = ((D + 127) // 128) * 128
    w_t = fc2_weight.T                                            # (E, D)
    b = fc2_bias
    if D_pad != D:
        w_t = jnp.pad(w_t, ((0, 0), (0, D_pad - D)))
        b = jnp.pad(b, (0, D_pad - D))
    b2d = b.reshape(1, D_pad)

    # Batch tile: keep grid=(1,) for small B; cap tiles at 1024 rows for large B
    # (fits v7x's 64 MiB VMEM with double-buffered output at real BERT widths).
    if batch_tile is None:
        batch_tile = B if B <= 1024 else 1024
    tb = batch_tile
    assert B % tb == 0, "B must be divisible by batch_tile"

    task2d = task_ids.astype(jnp.int32).reshape(B, 1)

    out = pl.pallas_call(
        _task_embedding_kernel,
        out_shape=jax.ShapeDtypeStruct((B, D_pad), jnp.float32),
        grid_spec=pltpu.PrefetchScalarGridSpec(
            num_scalar_prefetch=0,
            grid=(B // tb,),
            in_specs=[
                pl.BlockSpec((tb, 1), lambda i: (i, 0)),            # task ids tile
                pl.BlockSpec((num_tasks, E), lambda i: (0, 0)),     # full table (invariant)
                pl.BlockSpec((E, D_pad), lambda i: (0, 0)),         # full weight^T (invariant)
                pl.BlockSpec((1, D_pad), lambda i: (0, 0)),         # bias (invariant)
            ],
            out_specs=pl.BlockSpec((tb, D_pad), lambda i: (i, 0)),
            scratch_shapes=[pltpu.VMEM((num_tasks, D_pad), jnp.float32)],
        ),
        compiler_params=pltpu.CompilerParams(
            # "arbitrary": the fused scratch is written only on program_id==0, so the
            # grid must run sequentially on one core.
            dimension_semantics=("arbitrary",)),
    )(task2d, emb_table, w_t, b2d)

    if D_pad != D:
        out = out[:, :D]
    return out


if __name__ == "__main__":
    # Small, deterministic setup consistent with the module's __init__.
    num_tasks, embedding_dim, bert_dim = 8, 32, 128
    batch = 8

    key = jax.random.PRNGKey(0)
    k_tab, k_w, k_b, k_task = jax.random.split(key, 4)

    emb_table = jax.random.normal(k_tab, (num_tasks, embedding_dim), jnp.float32)
    fc2_weight = (jax.random.normal(k_w, (bert_dim, embedding_dim), jnp.float32)
                  * (1.0 / jnp.sqrt(embedding_dim)))
    fc2_bias = jax.random.normal(k_b, (bert_dim,), jnp.float32) * 0.01
    task_ids = jax.random.randint(k_task, (batch,), 0, num_tasks, jnp.int32)

    out = nlp_task_embedding(task_ids, emb_table, fc2_weight, fc2_bias)
    out = jax.block_until_ready(out)

    # Pure-JAX reference check (same semantics as the PyTorch forward).
    emb = emb_table[task_ids]                        # Embedding lookup
    ref = jnp.maximum(emb, 0.0) @ fc2_weight.T + fc2_bias
    assert out.shape == (batch, bert_dim)
    assert jnp.allclose(out, ref, atol=1e-5, rtol=1e-5), "mismatch vs reference"

    print("KERNEL_OK")
</pallas_src>

<mosaic_0001>
module attributes {stable_mosaic.version = 11 : i64} {
  func.func @_task_embedding_kernel(%arg0: i32, %arg1: memref<8x1xi32, #tpu.memory_space<vmem>>, %arg2: memref<8x32xf32, #tpu.memory_space<vmem>>, %arg3: memref<32x128xf32, #tpu.memory_space<vmem>>, %arg4: memref<1x128xf32, #tpu.memory_space<vmem>>, %arg5: memref<8x128xf32, #tpu.memory_space<vmem>>, %arg6: memref<8x128xf32, #tpu.memory_space<vmem>>) attributes {dimension_semantics = [#tpu.dimension_semantics<arbitrary>], iteration_bounds = array<i64: 1>, scalar_prefetch = 0 : i64, scratch_operands = 1 : i64, tpu.core_type = #tpu.core_type<tc>, window_params = [{transform_indices = @transform_0, window_bounds = array<i64: 8, 1>}, {pipeline_mode = #tpu.pipeline_mode<synchronous>, transform_indices = @transform_1, window_bounds = array<i64: 8, 32>}, {pipeline_mode = #tpu.pipeline_mode<synchronous>, transform_indices = @transform_2, window_bounds = array<i64: 32, 128>}, {pipeline_mode = #tpu.pipeline_mode<synchronous>, transform_indices = @transform_3, window_bounds = array<i64: 1, 128>}, {transform_indices = @transform_4, window_bounds = array<i64: 8, 128>}]} {
    %c0_i32 = arith.constant 0 : i32
    %0 = arith.cmpi eq, %arg0, %c0_i32 : i32
    %1 = arith.extui %0 : i1 to i32
    %c0_i32_0 = arith.constant 0 : i32
    %2 = arith.cmpi ne, %1, %c0_i32_0 : i32
    scf.if %2 {
      %c0_6 = arith.constant 0 : index
      %c0_7 = arith.constant 0 : index
      %12 = vector.load %arg2[%c0_6, %c0_7] : memref<8x32xf32, #tpu.memory_space<vmem>>, vector<8x32xf32>
      %cst_8 = arith.constant 0.000000e+00 : f32
      %13 = vector.broadcast %cst_8 : f32 to vector<8x32xf32>
      %14 = arith.maximumf %12, %13 : vector<8x32xf32>
      %c0_9 = arith.constant 0 : index
      %c0_10 = arith.constant 0 : index
      %15 = vector.load %arg3[%c0_9, %c0_10] : memref<32x128xf32, #tpu.memory_space<vmem>>, vector<32x128xf32>
      %cst_11 = arith.constant dense<0.000000e+00> : vector<8x128xf32>
      %16 = tpu.matmul %14, %15, %cst_11 {dimension_numbers = #tpu.dot_dimension_numbers<[1], [0], [0], [1], [0, 0, 1, 1], [], []>} : vector<8x32xf32>, vector<32x128xf32>, vector<8x128xf32> -> vector<8x128xf32>
      %c0_12 = arith.constant 0 : index
      %c0_13 = arith.constant 0 : index
      %17 = vector.load %arg4[%c0_12, %c0_13] : memref<1x128xf32, #tpu.memory_space<vmem>>, vector<1x128xf32>
      %18 = vector.broadcast %17 : vector<1x128xf32> to vector<8x128xf32>
      %19 = arith.addf %16, %18 : vector<8x128xf32>
      %c0_14 = arith.constant 0 : index
      %c0_15 = arith.constant 0 : index
      %20 = vector.load %arg6[%c0_14, %c0_15] : memref<8x128xf32, #tpu.memory_space<vmem>>, vector<8x128xf32>
      tpu.vector_store %arg6[%c0_14, %c0_15], %19 {strides = array<i32>} : memref<8x128xf32, #tpu.memory_space<vmem>>, vector<8x128xf32>,
    } else {
    }
    %c0 = arith.constant 0 : index
    %c0_1 = arith.constant 0 : index
    %3 = vector.load %arg1[%c0, %c0_1] : memref<8x1xi32, #tpu.memory_space<vmem>>, vector<8x1xi32>
    %4 = tpu.iota {dimensions = array<i32: 1>} : vector<8x8xi32>
    %5 = vector.broadcast %3 : vector<8x1xi32> to vector<8x8xi32>
    %6 = arith.cmpi eq, %5, %4 : vector<8x8xi32>
    %7 = arith.extui %6 : vector<8x8xi1> to vector<8x8xi32>
    %8 = arith.sitofp %7 : vector<8x8xi32> to vector<8x8xf32>
    %c0_2 = arith.constant 0 : index
    %c0_3 = arith.constant 0 : index
    %9 = vector.load %arg6[%c0_2, %c0_3] : memref<8x128xf32, #tpu.memory_space<vmem>>, vector<8x128xf32>
    %cst = arith.constant dense<0.000000e+00> : vector<8x128xf32>
    %10 = tpu.matmul %8, %9, %cst {dimension_numbers = #tpu.dot_dimension_numbers<[1], [0], [0], [1], [0, 0, 1, 1], [], []>} : vector<8x8xf32>, vector<8x128xf32>, vector<8x128xf32> -> vector<8x128xf32>
    %c0_4 = arith.constant 0 : index
    %c0_5 = arith.constant 0 : index
    %11 = vector.load %arg5[%c0_4, %c0_5] : memref<8x128xf32, #tpu.memory_space<vmem>>, vector<8x128xf32>
    tpu.vector_store %arg5[%c0_4, %c0_5], %10 {strides = array<i32>} : memref<8x128xf32, #tpu.memory_space<vmem>>, vector<8x128xf32>,
    return
  }
  func.func @transform_0(%arg0: i32) -> (i32, i32) {
    %c0_i32 = arith.constant 0 : i32
    %c0_i32_0 = arith.constant 0 : i32
    return %arg0, %c0_i32 : i32, i32
  }
  func.func @transform_1(%arg0: i32) -> (i32, i32) {
    %c0_i32 = arith.constant 0 : i32
    %c0_i32_0 = arith.constant 0 : i32
    %c0_i32_1 = arith.constant 0 : i32
    return %c0_i32, %c0_i32_0 : i32, i32
  }
  func.func @transform_2(%arg0: i32) -> (i32, i32) {
    %c0_i32 = arith.constant 0 : i32
    %c0_i32_0 = arith.constant 0 : i32
    %c0_i32_1 = arith.constant 0 : i32
    return %c0_i32, %c0_i32_0 : i32, i32
  }
  func.func @transform_3(%arg0: i32) -> (i32, i32) {
    %c0_i32 = arith.constant 0 : i32
    %c0_i32_0 = arith.constant 0 : i32
    %c0_i32_1 = arith.constant 0 : i32
    return %c0_i32, %c0_i32_0 : i32, i32
  }
  func.func @transform_4(%arg0: i32) -> (i32, i32) {
    %c0_i32 = arith.constant 0 : i32
    %c0_i32_0 = arith.constant 0 : i32
    return %arg0, %c0_i32 : i32, i32
  }
}

</mosaic_0001>

<llo_original>
// kernel: tpu_custom_call.1
$region0: #{tpu_custom_call.1}
  #allocation0 [shape = 'u32[]', space=smem, size = 0x4, offset = 0x4, fixed_abs, tag = 'smem constant byte address 0x4 - core index']
  #allocation1 [shape = 'u32[144,128]{1,0:T(1,128)}', space=vmem, size = 0x12000, scoped, tag = 'internal scratch']
  #allocation2 [shape = 'f32[8,128]{1,0:T(8,128)}', space=vmem, size = 0x1000, scoped, tag = 'scratch operand']
  %s0 = inlined_call_operand.vmem [shape: s32[8,1], index: 0, kind: input, shape index: {}]
  %s1 = inlined_call_operand.vmem [shape: f32[8,32], index: 1, kind: input, shape index: {}]
  %s2 = inlined_call_operand.hbm [shape: f32[32,128], index: 2, kind: input, shape index: {}]
  %s3 = inlined_call_operand.vmem [shape: f32[1,128], index: 3, kind: input, shape index: {}]
  %s4 = inlined_call_operand.hbm [shape: f32[8,128], index: 4, kind: output, shape index: {}]
  %s5 = sld [smem:[#allocation0]]
  $region34: #{tpu_custom_call.1} parent=0
    _
  %s7 = ssub.s32 1, %s5
  %s8 = scalar_select 0, %s7, %s5
  $region1: #{tpu_custom_call.1} parent=0
    #allocation3 [shape = 'u8[16384]{0}', space=vmem, size = 0x4000, scoped, tag = 'input window, operand 2, single buffered']
    #allocation4 [shape = 's32[1]{0}', space=sflag, size = 0x4, scoped, tag = 'scoped memory for tpu_custom_call.1']
    #allocation5 [shape = 's32[1]{0}', space=sflag, size = 0x4, scoped, tag = 'scoped memory for tpu_custom_call.1']
    #allocation6 [shape = 'u8[4096]{0}', space=vmem, size = 0x1000, scoped, tag = 'output window, operand 0, single buffered']
    %9 = vsyncpa [#allocation4], 0
    %10 = vsyncpa [#allocation5], 0
    // Predicated region
    $region2: #{tpu_custom_call.1} parent=1 // pred_check
      _
    $region3: #{tpu_custom_call.1} parent=1 // pred_check_branch
      %12 = sbr.rel (0) target = $region5
    $region4: #{tpu_custom_call.1} parent=1 // pred_region
      _
    $region5: #{tpu_custom_call.1} parent=1 // pred_fallthru
      _
    // Predicated region
    $region6: #{tpu_custom_call.1} parent=1 // pred_check
      _
    $region7: #{tpu_custom_call.1} parent=1 // pred_check_branch
      %14 = sbr.rel (0) target = $region9
    $region8: #{tpu_custom_call.1} parent=1 // pred_region
      _
    $region9: #{tpu_custom_call.1} parent=1 // pred_fallthru
      _
    // Predicated region
    $region10: #{tpu_custom_call.1} parent=1 // pred_check
      _
    $region11: #{tpu_custom_call.1} parent=1 // pred_check_branch
      %16 = sbr.rel (0) target = $region13
    $region12: #{tpu_custom_call.1} parent=1 // pred_region
      %s18 = ssub.s32 512, 512
      %19 = vsyncadd [#allocation4], %s18
      %s20 = sshll.u32 [#allocation3], 4
      %s21 = int_to_ptr.vmem [resolvable:$true] %s20
      %26 = dma.hbm_to_vmem [thread:$0]  %s2, 512, %s21, [#allocation4], 128, 128, 8
    $region13: #{tpu_custom_call.1} parent=1 // pred_fallthru
      _
    // Predicated region
    $region14: #{tpu_custom_call.1} parent=1 // pred_check
      _
    $region15: #{tpu_custom_call.1} parent=1 // pred_check_branch
      %28 = sbr.rel (0) target = $region17
    $region16: #{tpu_custom_call.1} parent=1 // pred_region
      _
    $region17: #{tpu_custom_call.1} parent=1 // pred_fallthru
      _
    // Predicated region
    $region18: #{tpu_custom_call.1} parent=1 // pred_check
      _
    $region19: #{tpu_custom_call.1} parent=1 // pred_check_branch
      %30 = sbr.rel (0) target = $region21
    $region20: #{tpu_custom_call.1} parent=1 // pred_region
      %31 = dma.done [#allocation4], 512
    $region21: #{tpu_custom_call.1} parent=1 // pred_fallthru
      _
    %p32 = scmp.eq.s32.totalorder 0, 0
    // Predicated region
    $region22: #{tpu_custom_call.1} parent=1 // pred_check
      %p33 = pneg %p32
    $region23: #{tpu_custom_call.1} parent=1 // pred_check_branch
      %35 = sbr.rel (%p33) target = $region25
    $region24: #{tpu_custom_call.1} parent=1 // pred_region
      %v36 = vld [vmem:[%s1] sm:$0xff]
      %v37 = vmax.f32 %v36, 0.0
      %v38 = vld [vmem:[#allocation3] sm:$0xff]
      %v39 = vld [vmem:[#allocation3 + $0x8] sm:$0xff]
      %v40 = vld [vmem:[#allocation3 + $0x10] sm:$0xff]
      %v41 = vld [vmem:[#allocation3 + $0x18] sm:$0xff]
      %v42 = vld [vmem:[%s3] sm:$0x1]
      %v44 = vlaneseq
      %v45 = vshrl.u32 %v44, 7
      %v46 = vsub.s32 0, %v45
      %v47 = vrot.slane %v42, %v46
      %vm49 = vcmask 261120
      %v51 = vsel %vm49, %v37, 0
      %53 = vmatprep.subr.mxu0 0.0
      %54 = vmatpush1.msra.mxu0 %v38
      %55 = vmatprep.subr.mxu0 0.0
      %56 = vmatpush1.msra.mxu0 %v39
      %57 = vmatprep.subr.mxu0 0.0
      %58 = vmatpush1.msra.mxu0 %v40
      %59 = vmatprep.subr.mxu0 0.0
      %60 = vmatpush1.msra.mxu0 %v41
      %61 = vmatprep.subr.mxu0 0.0
      %62 = vmatpush1.msra.mxu0 0.0
      %63 = vmatprep.subr.mxu0 0.0
      %64 = vmatpush1.msra.mxu0 0.0
      %65 = vmatprep.subr.mxu0 0.0
      %66 = vmatpush1.msra.mxu0 0.0
      %67 = vmatprep.subr.mxu0 0.0
      %68 = vmatpush1.msra.mxu0 0.0
      %69 = vmatprep.subr.mxu0 0.0
      %70 = vmatpush1.msra.mxu0 0.0
      %71 = vmatprep.subr.mxu0 0.0
      %72 = vmatpush1.msra.mxu0 0.0
      %73 = vmatprep.subr.mxu0 0.0
      %74 = vmatpush1.msra.mxu0 0.0
      %75 = vmatprep.subr.mxu0 0.0
      %76 = vmatpush1.msra.mxu0 0.0
      %77 = vmatprep.subr.mxu0 0.0
      %78 = vmatpush1.msra.mxu0 0.0
      %79 = vmatprep.subr.mxu0 0.0
      %80 = vmatpush1.msra.mxu0 0.0
      %81 = vmatprep.subr.mxu0 0.0
      %82 = vmatpush1.msra.mxu0 0.0
      %83 = vmatprep.subr.mxu0 0.0
      %84 = vmatpush1.msra.mxu0 0.0
      %85 = vmatprep.subr.mxu0 0.0
      %86 = vmatpush1.msra.mxu0 0.0
      %87 = vmatprep.subr.mxu0 0.0
      %88 = vmatpush1.msra.mxu0 0.0
      %89 = vmatprep.subr.mxu0 0.0
      %90 = vmatpush1.msra.mxu0 0.0
      %91 = vmatprep.subr.mxu0 0.0
      %92 = vmatpush1.msra.mxu0 0.0
      %93 = vmatprep.subr.mxu0 0.0
      %94 = vmatpush1.msra.mxu0 0.0
      %95 = vmatprep.subr.mxu0 0.0
      %96 = vmatpush1.msra.mxu0 0.0
      %97 = vmatprep.subr.mxu0 0.0
      %98 = vmatpush1.msra.mxu0 0.0
      %99 = vmatprep.subr.mxu0 0.0
      %100 = vmatpush1.msra.mxu0 0.0
      %101 = vmatprep.subr.mxu0 0.0
      %102 = vmatpush1.msra.mxu0 0.0
      %103 = vmatprep.subr.mxu0 0.0
      %104 = vmatpush1.msra.mxu0 0.0
      %105 = vmatprep.subr.mxu0 0.0
      %106 = vmatpush1.msra.mxu0 0.0
      %107 = vmatprep.subr.mxu0 0.0
      %108 = vmatpush1.msra.mxu0 0.0
      %109 = vmatprep.subr.mxu0 0.0
      %110 = vmatpush1.msra.mxu0 0.0
      %111 = vmatprep.subr.mxu0 0.0
      %112 = vmatpush1.msra.mxu0 0.0
      %113 = vmatprep.subr.mxu0 0.0
      %114 = vmatpush1.msra.mxu0 0.0
      %115 = vmatprep.subr.mxu0 0.0
      %116 = vmatpush1.msra.mxu0 0.0
      %117 = vmatprep.mubr.f32.mxu0 0.0
      %118 = vmatmul.mubr.f32.gmra.mrb[0].mxu0 %v51
      %v119 = vpop.f32.mrb[0].mxu0
      %v120 = vadd.f32 %v47, %v119
      %v121 = vpop.f32.mrb[0].mxu0
      %122 = vdwg.mxu0
      %123 = vst [vmem:[#allocation2] sm:$0xff] %v120
    $region25: #{tpu_custom_call.1} parent=1 // pred_fallthru
      _
    %v124 = vld [vmem:[%s0] sm:$0xff]
    %v125 = vlaneseq
    %v126 = vand.u32 %v125, 127
    %127 = vset.pattern.permute.xlu0 0
    %128 = vperm.xlu0 %127, %v124
    %v129 = vpop.permute.xlu0 %128
    %vm130 = vcmp.eq.s32.totalorder %v129, %v126
    %v131 = vsel %vm130, 1, 0
    %v132 = vcvt.s32.f32 %v131
    %v133 = vld [vmem:[#allocation2] sm:$0xff]
    %vm134 = vcmask 64512
    %v136 = vsel %vm134, %v132, 0
    %138 = vmatprep.subr.mxu0 0.0
    %139 = vmatpush1.msra.mxu0 %v133
    %140 = vmatprep.subr.mxu0 0.0
    %141 = vmatpush1.msra.mxu0 0.0
    %142 = vmatprep.subr.mxu0 0.0
    %143 = vmatpush1.msra.mxu0 0.0
    %144 = vmatprep.subr.mxu0 0.0
    %145 = vmatpush1.msra.mxu0 0.0
    %146 = vmatprep.subr.mxu0 0.0
    %147 = vmatpush1.msra.mxu0 0.0
    %148 = vmatprep.subr.mxu0 0.0
    %149 = vmatpush1.msra.mxu0 0.0
    %150 = vmatprep.subr.mxu0 0.0
    %151 = vmatpush1.msra.mxu0 0.0
    %152 = vmatprep.subr.mxu0 0.0
    %153 = vmatpush1.msra.mxu0 0.0
    %154 = vmatprep.subr.mxu0 0.0
    %155 = vmatpush1.msra.mxu0 0.0
    %156 = vmatprep.subr.mxu0 0.0
    %157 = vmatpush1.msra.mxu0 0.0
    %158 = vmatprep.subr.mxu0 0.0
    %159 = vmatpush1.msra.mxu0 0.0
    %160 = vmatprep.subr.mxu0 0.0
    %161 = vmatpush1.msra.mxu0 0.0
    %162 = vmatprep.subr.mxu0 0.0
    %163 = vmatpush1.msra.mxu0 0.0
    %164 = vmatprep.subr.mxu0 0.0
    %165 = vmatpush1.msra.mxu0 0.0
    %166 = vmatprep.subr.mxu0 0.0
    %167 = vmatpush1.msra.mxu0 0.0
    %168 = vmatprep.subr.mxu0 0.0
    %169 = vmatpush1.msra.mxu0 0.0
    %170 = vmatprep.subr.mxu0 0.0
    %171 = vmatpush1.msra.mxu0 0.0
    %172 = vmatprep.subr.mxu0 0.0
    %173 = vmatpush1.msra.mxu0 0.0
    %174 = vmatprep.subr.mxu0 0.0
    %175 = vmatpush1.msra.mxu0 0.0
    %176 = vmatprep.subr.mxu0 0.0
    %177 = vmatpush1.msra.mxu0 0.0
    %178 = vmatprep.subr.mxu0 0.0
    %179 = vmatpush1.msra.mxu0 0.0
    %180 = vmatprep.subr.mxu0 0.0
    %181 = vmatpush1.msra.mxu0 0.0
    %182 = vmatprep.subr.mxu0 0.0
    %183 = vmatpush1.msra.mxu0 0.0
    %184 = vmatprep.subr.mxu0 0.0
    %185 = vmatpush1.msra.mxu0 0.0
    %186 = vmatprep.subr.mxu0 0.0
    %187 = vmatpush1.msra.mxu0 0.0
    %188 = vmatprep.subr.mxu0 0.0
    %189 = vmatpush1.msra.mxu0 0.0
    %190 = vmatprep.subr.mxu0 0.0
    %191 = vmatpush1.msra.mxu0 0.0
    %192 = vmatprep.subr.mxu0 0.0
    %193 = vmatpush1.msra.mxu0 0.0
    %194 = vmatprep.subr.mxu0 0.0
    %195 = vmatpush1.msra.mxu0 0.0
    %196 = vmatprep.subr.mxu0 0.0
    %197 = vmatpush1.msra.mxu0 0.0
    %198 = vmatprep.subr.mxu0 0.0
    %199 = vmatpush1.msra.mxu0 0.0
    %200 = vmatprep.subr.mxu0 0.0
    %201 = vmatpush1.msra.mxu0 0.0
    %202 = vmatprep.mubr.f32.mxu0 0.0
    %203 = vmatmul.mubr.f32.gmra.mrb[0].mxu0 %v136
    %v204 = vpop.f32.mrb[0].mxu0
    %v205 = vadd.f32 0.0, %v204
    %v206 = vpop.f32.mrb[0].mxu0
    %207 = vdwg.mxu0
    %208 = vst [vmem:[#allocation6] sm:$0xff] %v205
    // Predicated region
    $region26: #{tpu_custom_call.1} parent=1 // pred_check
      _
    $region27: #{tpu_custom_call.1} parent=1 // pred_check_branch
      %210 = sbr.rel (0) target = $region29
    $region28: #{tpu_custom_call.1} parent=1 // pred_region
      %s212 = ssub.s32 128, 128
      %213 = vsyncadd [#allocation5], %s212
      %s215 = sshll.u32 [#allocation6], 4
      %s216 = int_to_ptr.vmem [resolvable:$true] %s215
      %218 = dma.vmem_to_hbm [thread:$0]  %s216, 128, %s4, [#allocation5]
    $region29: #{tpu_custom_call.1} parent=1 // pred_fallthru
      _
    // Predicated region
    $region30: #{tpu_custom_call.1} parent=1 // pred_check
      _
    $region31: #{tpu_custom_call.1} parent=1 // pred_check_branch
      %220 = sbr.rel (0) target = $region33
    $region32: #{tpu_custom_call.1} parent=1 // pred_region
      %221 = dma.done [#allocation5], 128
    $region33: #{tpu_custom_call.1} parent=1 // pred_fallthru
      _
    %222 = vsyncpa [#allocation4], 1
    %223 = vsyncpa [#allocation5], 1

</llo_original>
